<compile_context>
chip_gen: v7x
topology: tpu7x:2x2x1
jax: 0.10.0
libtpu: 0.0.40
codegen_flags: <defaults>
</compile_context>

<pallas_src>
import functools

import jax
import jax.numpy as jnp
from jax.experimental import pallas as pl
from jax.experimental.pallas import tpu as pltpu

_LANE = 128          # TPU lane width; batch is padded to a multiple of this.
_MAX_TILE_B = 1024   # rows per grid step (well inside v7x scoped-VMEM limit).


# ----------------------------------------------------------------------------
# Fused kernel (transposed layout):
#   xt_ref : (D, TILE_B)   input slab, batch on lanes
#   w1t_ref: (H, D)        fc1 weight, transposed
#   b1_ref : (H, 1)        fc1 bias (broadcast over lanes)
#   w2t_ref: (H, H)        fc2 weight, transposed
#   b2_ref : (H, 1)        fc2 bias
#   o_ref  : (H, TILE_B)   output slab
# ----------------------------------------------------------------------------
def _personal_mlp_kernel(xt_ref, w1t_ref, b1_ref, w2t_ref, b2_ref, o_ref):
    xt = xt_ref[...]            # (D, TB)
    w1t = w1t_ref[...]          # (H, D)
    d = xt_ref.shape[0]         # static (4)

    # ---- fc1 + ReLU on the VPU: K=4 unrolled as broadcast multiply-adds ----
    acc = w1t[:, 0:1] * xt[0:1, :]                      # (H, 1)*(1, TB) -> (H, TB)
    for k in range(1, d):
        acc = acc + w1t[:, k:k + 1] * xt[k:k + 1, :]
    h = jnp.maximum(acc + b1_ref[...], 0.0)             # (H, TB)

    # ---- fc2 + ReLU on the MXU: (H,H) @ (H,TB), N = lane-wide batch axis ----
    y = jnp.dot(w2t_ref[...], h, preferred_element_type=jnp.float32)
    o_ref[...] = jnp.maximum(y + b2_ref[...], 0.0)


# ----------------------------------------------------------------------------
# Wrapper: layout plumbing (pad batch, transpose), grid setup, un-pad output.
# ----------------------------------------------------------------------------
def personal_info_encoder(x, w1, b1, w2, b2):
    """x: (B, D) f32; w1: (D, H); b1: (H,); w2: (H, H); b2: (H,). Returns (B, H)."""
    x = x.astype(jnp.float32)
    B, D = x.shape
    H = w1.shape[1]

    # Pad batch to a lane multiple, pick a tile, make padded batch a tile multiple.
    b_pad = max(_LANE, -(-B // _LANE) * _LANE)
    tile_b = min(_MAX_TILE_B, b_pad)
    b_pad = -(-b_pad // tile_b) * tile_b
    grid = (b_pad // tile_b,)

    # Lane-dense transposed operands (wrapper-side plumbing, fused by XLA).
    xt = jnp.pad(x, ((0, b_pad - B), (0, 0))).T          # (D, b_pad)
    w1t = w1.T.astype(jnp.float32)                       # (H, D)
    w2t = w2.T.astype(jnp.float32)                       # (H, H)
    b1c = b1.reshape(H, 1).astype(jnp.float32)           # (H, 1)
    b2c = b2.reshape(H, 1).astype(jnp.float32)           # (H, 1)

    out_t = pl.pallas_call(
        _personal_mlp_kernel,
        out_shape=jax.ShapeDtypeStruct((H, b_pad), jnp.float32),
        grid_spec=pltpu.PrefetchScalarGridSpec(
            num_scalar_prefetch=0,
            grid=grid,
            in_specs=[
                pl.BlockSpec((D, tile_b), lambda i: (0, i)),   # x slab: streamed
                pl.BlockSpec((H, D), lambda i: (0, 0)),        # w1^T: resident
                pl.BlockSpec((H, 1), lambda i: (0, 0)),        # b1:   resident
                pl.BlockSpec((H, H), lambda i: (0, 0)),        # w2^T: resident
                pl.BlockSpec((H, 1), lambda i: (0, 0)),        # b2:   resident
            ],
            out_specs=pl.BlockSpec((H, tile_b), lambda i: (0, i)),
        ),
        compiler_params=pltpu.CompilerParams(
            dimension_semantics=("parallel",),                 # shard over 2 TCs on v7x
        ),
    )(xt, w1t, b1c, w2t, b2c)

    # Strip batch padding and return (B, H) like the PyTorch module.
    return out_t[:, :B].T


# ----------------------------------------------------------------------------
# Parameter construction (deterministic, PyTorch nn.Linear-style init).
# Weights stored as (in, out); biases as (out,).
# ----------------------------------------------------------------------------
def init_params(key, input_dim=4, hidden_dim=32):
    def linear(k, din, dout):
        kw, kb = jax.random.split(k)
        bound = 1.0 / jnp.sqrt(jnp.float32(din))
        w = jax.random.uniform(kw, (din, dout), jnp.float32, -bound, bound)
        b = jax.random.uniform(kb, (dout,), jnp.float32, -bound, bound)
        return w, b

    k1, k2 = jax.random.split(key)
    w1, b1 = linear(k1, input_dim, hidden_dim)
    w2, b2 = linear(k2, hidden_dim, hidden_dim)
    return {"w1": w1, "b1": b1, "w2": w2, "b2": b2}


@jax.jit
def forward(params, x):
    return personal_info_encoder(
        x, params["w1"], params["b1"], params["w2"], params["b2"]
    )


def _reference(params, x):
    h = jnp.maximum(x @ params["w1"] + params["b1"][None, :], 0.0)
    return jnp.maximum(h @ params["w2"] + params["b2"][None, :], 0.0)


if __name__ == "__main__":
    key = jax.random.PRNGKey(0)
    kp, kx1, kx2 = jax.random.split(key, 3)

    params = init_params(kp, input_dim=4, hidden_dim=32)

    # Small case from the spec: batch=2, input_dim=4.
    x_small = jax.random.normal(kx1, (2, 4), jnp.float32)
    out_small = forward(params, x_small)
    jax.block_until_ready(out_small)
    ref_small = _reference(params, x_small)
    assert out_small.shape == (2, 32), out_small.shape
    assert bool(jnp.allclose(out_small, ref_small, atol=1e-5, rtol=1e-5)), \
        "mismatch vs reference (small batch)"

    # Larger case to exercise the batch grid (multiple tiles + remainder padding).
    x_big = jax.random.normal(kx2, (2500, 4), jnp.float32)
    out_big = forward(params, x_big)
    jax.block_until_ready(out_big)
    ref_big = _reference(params, x_big)
    assert out_big.shape == (2500, 32), out_big.shape
    assert bool(jnp.allclose(out_big, ref_big, atol=1e-5, rtol=1e-5)), \
        "mismatch vs reference (tiled batch)"

    print("KERNEL_OK")
</pallas_src>

<mosaic_0001>
module attributes {stable_mosaic.version = 11 : i64} {
  func.func @_personal_mlp_kernel(%arg0: i32, %arg1: memref<4x128xf32, #tpu.memory_space<vmem>>, %arg2: memref<32x4xf32, #tpu.memory_space<vmem>>, %arg3: memref<32x1xf32, #tpu.memory_space<vmem>>, %arg4: memref<32x32xf32, #tpu.memory_space<vmem>>, %arg5: memref<32x1xf32, #tpu.memory_space<vmem>>, %arg6: memref<32x128xf32, #tpu.memory_space<vmem>>) attributes {dimension_semantics = [#tpu.dimension_semantics<parallel>], iteration_bounds = array<i64: 1>, scalar_prefetch = 0 : i64, scratch_operands = 0 : i64, tpu.core_type = #tpu.core_type<tc>, window_params = [{transform_indices = @transform_0, window_bounds = array<i64: 4, 128>}, {pipeline_mode = #tpu.pipeline_mode<synchronous>, transform_indices = @transform_1, window_bounds = array<i64: 32, 4>}, {pipeline_mode = #tpu.pipeline_mode<synchronous>, transform_indices = @transform_2, window_bounds = array<i64: 32, 1>}, {pipeline_mode = #tpu.pipeline_mode<synchronous>, transform_indices = @transform_3, window_bounds = array<i64: 32, 32>}, {pipeline_mode = #tpu.pipeline_mode<synchronous>, transform_indices = @transform_4, window_bounds = array<i64: 32, 1>}, {transform_indices = @transform_5, window_bounds = array<i64: 32, 128>}]} {
    %c0 = arith.constant 0 : index
    %c0_0 = arith.constant 0 : index
    %0 = vector.load %arg1[%c0, %c0_0] : memref<4x128xf32, #tpu.memory_space<vmem>>, vector<4x128xf32>
    %c0_1 = arith.constant 0 : index
    %c0_2 = arith.constant 0 : index
    %1 = vector.load %arg2[%c0_1, %c0_2] : memref<32x4xf32, #tpu.memory_space<vmem>>, vector<32x4xf32>
    %2 = vector.extract_strided_slice %1 {offsets = [0, 0], sizes = [32, 1], strides = [1, 1]} : vector<32x4xf32> to vector<32x1xf32>
    %3 = vector.extract_strided_slice %0 {offsets = [0, 0], sizes = [1, 128], strides = [1, 1]} : vector<4x128xf32> to vector<1x128xf32>
    %4 = vector.broadcast %2 : vector<32x1xf32> to vector<32x128xf32>
    %5 = vector.broadcast %3 : vector<1x128xf32> to vector<32x128xf32>
    %6 = arith.mulf %4, %5 : vector<32x128xf32>
    %7 = vector.extract_strided_slice %1 {offsets = [0, 1], sizes = [32, 1], strides = [1, 1]} : vector<32x4xf32> to vector<32x1xf32>
    %8 = vector.extract_strided_slice %0 {offsets = [1, 0], sizes = [1, 128], strides = [1, 1]} : vector<4x128xf32> to vector<1x128xf32>
    %9 = vector.broadcast %7 : vector<32x1xf32> to vector<32x128xf32>
    %10 = vector.broadcast %8 : vector<1x128xf32> to vector<32x128xf32>
    %11 = arith.mulf %9, %10 : vector<32x128xf32>
    %12 = arith.addf %6, %11 : vector<32x128xf32>
    %13 = vector.extract_strided_slice %1 {offsets = [0, 2], sizes = [32, 1], strides = [1, 1]} : vector<32x4xf32> to vector<32x1xf32>
    %14 = vector.extract_strided_slice %0 {offsets = [2, 0], sizes = [1, 128], strides = [1, 1]} : vector<4x128xf32> to vector<1x128xf32>
    %15 = vector.broadcast %13 : vector<32x1xf32> to vector<32x128xf32>
    %16 = vector.broadcast %14 : vector<1x128xf32> to vector<32x128xf32>
    %17 = arith.mulf %15, %16 : vector<32x128xf32>
    %18 = arith.addf %12, %17 : vector<32x128xf32>
    %19 = vector.extract_strided_slice %1 {offsets = [0, 3], sizes = [32, 1], strides = [1, 1]} : vector<32x4xf32> to vector<32x1xf32>
    %20 = vector.extract_strided_slice %0 {offsets = [3, 0], sizes = [1, 128], strides = [1, 1]} : vector<4x128xf32> to vector<1x128xf32>
    %21 = vector.broadcast %19 : vector<32x1xf32> to vector<32x128xf32>
    %22 = vector.broadcast %20 : vector<1x128xf32> to vector<32x128xf32>
    %23 = arith.mulf %21, %22 : vector<32x128xf32>
    %24 = arith.addf %18, %23 : vector<32x128xf32>
    %c0_3 = arith.constant 0 : index
    %c0_4 = arith.constant 0 : index
    %25 = vector.load %arg3[%c0_3, %c0_4] : memref<32x1xf32, #tpu.memory_space<vmem>>, vector<32x1xf32>
    %26 = vector.broadcast %25 : vector<32x1xf32> to vector<32x128xf32>
    %27 = arith.addf %24, %26 : vector<32x128xf32>
    %cst = arith.constant 0.000000e+00 : f32
    %28 = vector.broadcast %cst : f32 to vector<32x128xf32>
    %29 = arith.maximumf %27, %28 : vector<32x128xf32>
    %c0_5 = arith.constant 0 : index
    %c0_6 = arith.constant 0 : index
    %30 = vector.load %arg4[%c0_5, %c0_6] : memref<32x32xf32, #tpu.memory_space<vmem>>, vector<32x32xf32>
    %cst_7 = arith.constant dense<0.000000e+00> : vector<32x128xf32>
    %31 = tpu.matmul %30, %29, %cst_7 {dimension_numbers = #tpu.dot_dimension_numbers<[1], [0], [0], [1], [0, 0, 1, 1], [], []>} : vector<32x32xf32>, vector<32x128xf32>, vector<32x128xf32> -> vector<32x128xf32>
    %c0_8 = arith.constant 0 : index
    %c0_9 = arith.constant 0 : index
    %32 = vector.load %arg5[%c0_8, %c0_9] : memref<32x1xf32, #tpu.memory_space<vmem>>, vector<32x1xf32>
    %33 = vector.broadcast %32 : vector<32x1xf32> to vector<32x128xf32>
    %34 = arith.addf %31, %33 : vector<32x128xf32>
    %cst_10 = arith.constant 0.000000e+00 : f32
    %35 = vector.broadcast %cst_10 : f32 to vector<32x128xf32>
    %36 = arith.maximumf %34, %35 : vector<32x128xf32>
    %c0_11 = arith.constant 0 : index
    %c0_12 = arith.constant 0 : index
    %37 = vector.load %arg6[%c0_11, %c0_12] : memref<32x128xf32, #tpu.memory_space<vmem>>, vector<32x128xf32>
    tpu.vector_store %arg6[%c0_11, %c0_12], %36 {strides = array<i32>} : memref<32x128xf32, #tpu.memory_space<vmem>>, vector<32x128xf32>,
    return
  }
  func.func @transform_0(%arg0: i32) -> (i32, i32) {
    %c0_i32 = arith.constant 0 : i32
    %c0_i32_0 = arith.constant 0 : i32
    return %c0_i32, %arg0 : i32, i32
  }
  func.func @transform_1(%arg0: i32) -> (i32, i32) {
    %c0_i32 = arith.constant 0 : i32
    %c0_i32_0 = arith.constant 0 : i32
    %c0_i32_1 = arith.constant 0 : i32
    return %c0_i32, %c0_i32_0 : i32, i32
  }
  func.func @transform_2(%arg0: i32) -> (i32, i32) {
    %c0_i32 = arith.constant 0 : i32
    %c0_i32_0 = arith.constant 0 : i32
    %c0_i32_1 = arith.constant 0 : i32
    return %c0_i32, %c0_i32_0 : i32, i32
  }
  func.func @transform_3(%arg0: i32) -> (i32, i32) {
    %c0_i32 = arith.constant 0 : i32
    %c0_i32_0 = arith.constant 0 : i32
    %c0_i32_1 = arith.constant 0 : i32
    return %c0_i32, %c0_i32_0 : i32, i32
  }
  func.func @transform_4(%arg0: i32) -> (i32, i32) {
    %c0_i32 = arith.constant 0 : i32
    %c0_i32_0 = arith.constant 0 : i32
    %c0_i32_1 = arith.constant 0 : i32
    return %c0_i32, %c0_i32_0 : i32, i32
  }
  func.func @transform_5(%arg0: i32) -> (i32, i32) {
    %c0_i32 = arith.constant 0 : i32
    %c0_i32_0 = arith.constant 0 : i32
    return %c0_i32, %arg0 : i32, i32
  }
}

</mosaic_0001>

<llo_original>
// kernel: forward.1
$region0: #{forward.1}
  #allocation0 [shape = 'u32[]', space=smem, size = 0x4, offset = 0x4, fixed_abs, tag = 'smem constant byte address 0x4 - core index']
  #allocation1 [shape = 'u32[144,128]{1,0:T(1,128)}', space=vmem, size = 0x12000, scoped, tag = 'internal scratch']
  %s0 = inlined_call_operand.vmem [shape: f32[4,128], index: 0, kind: input, shape index: {}]
  %s1 = inlined_call_operand.vmem [shape: f32[32,4], index: 1, kind: input, shape index: {}]
  %s2 = inlined_call_operand.vmem [shape: f32[32,1], index: 2, kind: input, shape index: {}]
  %s3 = inlined_call_operand.vmem [shape: f32[32,32], index: 3, kind: input, shape index: {}]
  %s4 = inlined_call_operand.vmem [shape: f32[32,1], index: 4, kind: input, shape index: {}]
  %s5 = inlined_call_operand.vmem [shape: f32[32,128], index: 5, kind: output, shape index: {}]
  %s6 = sld [smem:[#allocation0]]
  $region30: #{forward.1} parent=0
    _
  %s8 = ssub.s32 1, %s6
  %s9 = scalar_select 0, %s8, %s6
  // Predicated region
  $region2: #{forward.1} parent=0 // pred_check
    _
  $region3: #{forward.1} parent=0 // pred_check_branch
    %11 = sbr.rel (0) target = $region5
  $region4: #{forward.1} parent=0 // pred_region
    _
  $region5: #{forward.1} parent=0 // pred_fallthru
    _
  // Predicated region
  $region6: #{forward.1} parent=0 // pred_check
    _
  $region7: #{forward.1} parent=0 // pred_check_branch
    %13 = sbr.rel (0) target = $region9
  $region8: #{forward.1} parent=0 // pred_region
    _
  $region9: #{forward.1} parent=0 // pred_fallthru
    _
  // Predicated region
  $region10: #{forward.1} parent=0 // pred_check
    _
  $region11: #{forward.1} parent=0 // pred_check_branch
    %15 = sbr.rel (0) target = $region13
  $region12: #{forward.1} parent=0 // pred_region
    _
  $region13: #{forward.1} parent=0 // pred_fallthru
    _
  // Predicated region
  $region14: #{forward.1} parent=0 // pred_check
    _
  $region15: #{forward.1} parent=0 // pred_check_branch
    %17 = sbr.rel (0) target = $region17
  $region16: #{forward.1} parent=0 // pred_region
    _
  $region17: #{forward.1} parent=0 // pred_fallthru
    _
  // Predicated region
  $region18: #{forward.1} parent=0 // pred_check
    _
  $region19: #{forward.1} parent=0 // pred_check_branch
    %19 = sbr.rel (0) target = $region21
  $region20: #{forward.1} parent=0 // pred_region
    _
  $region21: #{forward.1} parent=0 // pred_fallthru
    _
  %v20 = vld [vmem:[%s0] sm:$0xf]
  %v21 = vld [vmem:[%s1] sm:$0xff]
  %v22 = vld [vmem:[%s1 + $0x8] sm:$0xff]
  %v23 = vld [vmem:[%s1 + $0x10] sm:$0xff]
  %v24 = vld [vmem:[%s1 + $0x18] sm:$0xff]
  %26 = vset.pattern.permute.xlu0 0
  %27 = vperm.xlu0 %26, %v21
  %v28 = vpop.permute.xlu0 %27
  %31 = vset.pattern.permute.xlu0 0
  %32 = vperm.xlu0 %31, %v22
  %v33 = vpop.permute.xlu0 %32
  %36 = vset.pattern.permute.xlu0 0
  %37 = vperm.xlu0 %36, %v23
  %v38 = vpop.permute.xlu0 %37
  %41 = vset.pattern.permute.xlu0 0
  %42 = vperm.xlu0 %41, %v24
  %v43 = vpop.permute.xlu0 %42
  %v45 = vlaneseq
  %v46 = vshrl.u32 %v45, 7
  %v47 = vsub.s32 0, %v46
  %v48 = vrot.slane %v20, %v47
  %v49 = vmul.f32 %v28, %v48
  %v50 = vmul.f32 %v33, %v48
  %v51 = vmul.f32 %v38, %v48
  %v52 = vmul.f32 %v43, %v48
  %53 = vset.pattern.permute.xlu0 1
  %54 = vperm.xlu0 %53, %v21
  %v55 = vpop.permute.xlu0 %54
  %57 = vset.pattern.permute.xlu0 1
  %58 = vperm.xlu0 %57, %v22
  %v59 = vpop.permute.xlu0 %58
  %61 = vset.pattern.permute.xlu0 1
  %62 = vperm.xlu0 %61, %v23
  %v63 = vpop.permute.xlu0 %62
  %65 = vset.pattern.permute.xlu0 1
  %66 = vperm.xlu0 %65, %v24
  %v67 = vpop.permute.xlu0 %66
  %v69 = vlaneseq
  %v70 = vshrl.u32 %v69, 7
  %v71 = vsub.s32 1, %v70
  %v72 = vrot.slane %v20, %v71
  %v73 = vmul.f32 %v55, %v72
  %v74 = vmul.f32 %v59, %v72
  %v75 = vmul.f32 %v63, %v72
  %v76 = vmul.f32 %v67, %v72
  %v77 = vadd.f32 %v49, %v73
  %v78 = vadd.f32 %v50, %v74
  %v79 = vadd.f32 %v51, %v75
  %v80 = vadd.f32 %v52, %v76
  %81 = vset.pattern.permute.xlu0 2
  %82 = vperm.xlu0 %81, %v21
  %v83 = vpop.permute.xlu0 %82
  %85 = vset.pattern.permute.xlu0 2
  %86 = vperm.xlu0 %85, %v22
  %v87 = vpop.permute.xlu0 %86
  %89 = vset.pattern.permute.xlu0 2
  %90 = vperm.xlu0 %89, %v23
  %v91 = vpop.permute.xlu0 %90
  %93 = vset.pattern.permute.xlu0 2
  %94 = vperm.xlu0 %93, %v24
  %v95 = vpop.permute.xlu0 %94
  %v97 = vlaneseq
  %v98 = vshrl.u32 %v97, 7
  %v99 = vsub.s32 2, %v98
  %v100 = vrot.slane %v20, %v99
  %v101 = vmul.f32 %v83, %v100
  %v102 = vmul.f32 %v87, %v100
  %v103 = vmul.f32 %v91, %v100
  %v104 = vmul.f32 %v95, %v100
  %v105 = vadd.f32 %v77, %v101
  %v106 = vadd.f32 %v78, %v102
  %v107 = vadd.f32 %v79, %v103
  %v108 = vadd.f32 %v80, %v104
  %109 = vset.pattern.permute.xlu0 3
  %110 = vperm.xlu0 %109, %v21
  %v111 = vpop.permute.xlu0 %110
  %113 = vset.pattern.permute.xlu0 3
  %114 = vperm.xlu0 %113, %v22
  %v115 = vpop.permute.xlu0 %114
  %117 = vset.pattern.permute.xlu0 3
  %118 = vperm.xlu0 %117, %v23
  %v119 = vpop.permute.xlu0 %118
  %121 = vset.pattern.permute.xlu0 3
  %122 = vperm.xlu0 %121, %v24
  %v123 = vpop.permute.xlu0 %122
  %v125 = vlaneseq
  %v126 = vshrl.u32 %v125, 7
  %v127 = vsub.s32 3, %v126
  %v128 = vrot.slane %v20, %v127
  %v129 = vmul.f32 %v111, %v128
  %v130 = vmul.f32 %v115, %v128
  %v131 = vmul.f32 %v119, %v128
  %v132 = vmul.f32 %v123, %v128
  %v133 = vadd.f32 %v105, %v129
  %v134 = vadd.f32 %v106, %v130
  %v135 = vadd.f32 %v107, %v131
  %v136 = vadd.f32 %v108, %v132
  %v137 = vld [vmem:[%s2] sm:$0xff]
  %v138 = vld [vmem:[%s2 + $0x8] sm:$0xff]
  %v139 = vld [vmem:[%s2 + $0x10] sm:$0xff]
  %v140 = vld [vmem:[%s2 + $0x18] sm:$0xff]
  %142 = vset.pattern.permute.xlu0 0
  %143 = vperm.xlu0 %142, %v137
  %v144 = vpop.permute.xlu0 %143
  %147 = vset.pattern.permute.xlu0 0
  %148 = vperm.xlu0 %147, %v138
  %v149 = vpop.permute.xlu0 %148
  %152 = vset.pattern.permute.xlu0 0
  %153 = vperm.xlu0 %152, %v139
  %v154 = vpop.permute.xlu0 %153
  %157 = vset.pattern.permute.xlu0 0
  %158 = vperm.xlu0 %157, %v140
  %v159 = vpop.permute.xlu0 %158
  %v161 = vadd.f32 %v133, %v144
  %v162 = vadd.f32 %v134, %v149
  %v163 = vadd.f32 %v135, %v154
  %v164 = vadd.f32 %v136, %v159
  %v165 = vmax.f32 %v161, 0.0
  %v166 = vmax.f32 %v162, 0.0
  %v167 = vmax.f32 %v163, 0.0
  %v168 = vmax.f32 %v164, 0.0
  %v169 = vld [vmem:[%s3] sm:$0xff]
  %v170 = vld [vmem:[%s3 + $0x8] sm:$0xff]
  %v171 = vld [vmem:[%s3 + $0x10] sm:$0xff]
  %v172 = vld [vmem:[%s3 + $0x18] sm:$0xff]
  %v173 = vld [vmem:[%s4] sm:$0xff]
  %v174 = vld [vmem:[%s4 + $0x8] sm:$0xff]
  %v175 = vld [vmem:[%s4 + $0x10] sm:$0xff]
  %v176 = vld [vmem:[%s4 + $0x18] sm:$0xff]
  %178 = vset.pattern.permute.xlu0 0
  %179 = vperm.xlu0 %178, %v173
  %v180 = vpop.permute.xlu0 %179
  %183 = vset.pattern.permute.xlu0 0
  %184 = vperm.xlu0 %183, %v174
  %v185 = vpop.permute.xlu0 %184
  %188 = vset.pattern.permute.xlu0 0
  %189 = vperm.xlu0 %188, %v175
  %v190 = vpop.permute.xlu0 %189
  %193 = vset.pattern.permute.xlu0 0
  %194 = vperm.xlu0 %193, %v176
  %v195 = vpop.permute.xlu0 %194
  %vm197 = vcmask 261120
  %v199 = vsel %vm197, %v169, 0
  %v202 = vsel %vm197, %v170, 0
  %v205 = vsel %vm197, %v171, 0
  %v208 = vsel %vm197, %v172, 0
  %210 = vmatprep.subr.mxu0 0.0
  %211 = vmatpush1.msra.mxu0 %v165
  %212 = vmatprep.subr.mxu0 0.0
  %213 = vmatpush1.msra.mxu0 %v166
  %214 = vmatprep.subr.mxu0 0.0
  %215 = vmatpush1.msra.mxu0 %v167
  %216 = vmatprep.subr.mxu0 0.0
  %217 = vmatpush1.msra.mxu0 %v168
  %218 = vmatprep.subr.mxu0 0.0
  %219 = vmatpush1.msra.mxu0 0.0
  %220 = vmatprep.subr.mxu0 0.0
  %221 = vmatpush1.msra.mxu0 0.0
  %222 = vmatprep.subr.mxu0 0.0
  %223 = vmatpush1.msra.mxu0 0.0
  %224 = vmatprep.subr.mxu0 0.0
  %225 = vmatpush1.msra.mxu0 0.0
  %226 = vmatprep.subr.mxu0 0.0
  %227 = vmatpush1.msra.mxu0 0.0
  %228 = vmatprep.subr.mxu0 0.0
  %229 = vmatpush1.msra.mxu0 0.0
  %230 = vmatprep.subr.mxu0 0.0
  %231 = vmatpush1.msra.mxu0 0.0
  %232 = vmatprep.subr.mxu0 0.0
  %233 = vmatpush1.msra.mxu0 0.0
  %234 = vmatprep.subr.mxu0 0.0
  %235 = vmatpush1.msra.mxu0 0.0
  %236 = vmatprep.subr.mxu0 0.0
  %237 = vmatpush1.msra.mxu0 0.0
  %238 = vmatprep.subr.mxu0 0.0
  %239 = vmatpush1.msra.mxu0 0.0
  %240 = vmatprep.subr.mxu0 0.0
  %241 = vmatpush1.msra.mxu0 0.0
  %242 = vmatprep.subr.mxu0 0.0
  %243 = vmatpush1.msra.mxu0 0.0
  %244 = vmatprep.subr.mxu0 0.0
  %245 = vmatpush1.msra.mxu0 0.0
  %246 = vmatprep.subr.mxu0 0.0
  %247 = vmatpush1.msra.mxu0 0.0
  %248 = vmatprep.subr.mxu0 0.0
  %249 = vmatpush1.msra.mxu0 0.0
  %250 = vmatprep.subr.mxu0 0.0
  %251 = vmatpush1.msra.mxu0 0.0
  %252 = vmatprep.subr.mxu0 0.0
  %253 = vmatpush1.msra.mxu0 0.0
  %254 = vmatprep.subr.mxu0 0.0
  %255 = vmatpush1.msra.mxu0 0.0
  %256 = vmatprep.subr.mxu0 0.0
  %257 = vmatpush1.msra.mxu0 0.0
  %258 = vmatprep.subr.mxu0 0.0
  %259 = vmatpush1.msra.mxu0 0.0
  %260 = vmatprep.subr.mxu0 0.0
  %261 = vmatpush1.msra.mxu0 0.0
  %262 = vmatprep.subr.mxu0 0.0
  %263 = vmatpush1.msra.mxu0 0.0
  %264 = vmatprep.subr.mxu0 0.0
  %265 = vmatpush1.msra.mxu0 0.0
  %266 = vmatprep.subr.mxu0 0.0
  %267 = vmatpush1.msra.mxu0 0.0
  %268 = vmatprep.subr.mxu0 0.0
  %269 = vmatpush1.msra.mxu0 0.0
  %270 = vmatprep.subr.mxu0 0.0
  %271 = vmatpush1.msra.mxu0 0.0
  %272 = vmatprep.subr.mxu0 0.0
  %273 = vmatpush1.msra.mxu0 0.0
  %274 = vmatprep.mubr.f32.mxu0 0.0
  %275 = vmatmul.mubr.f32.gmra.mrb[0].mxu0 %v199
  %v276 = vpop.f32.mrb[0].mxu0
  %v277 = vadd.f32 %v180, %v276
  %v278 = vpop.f32.mrb[0].mxu0
  %279 = vmatprep.mubr.f32.mxu0 0.0
  %280 = vmatmul.mubr.f32.gmra.mrb[0].mxu0 %v202
  %v281 = vpop.f32.mrb[0].mxu0
  %v282 = vadd.f32 %v185, %v281
  %v283 = vpop.f32.mrb[0].mxu0
  %284 = vmatprep.mubr.f32.mxu0 0.0
  %285 = vmatmul.mubr.f32.gmra.mrb[0].mxu0 %v205
  %v286 = vpop.f32.mrb[0].mxu0
  %v287 = vadd.f32 %v190, %v286
  %v288 = vpop.f32.mrb[0].mxu0
  %289 = vmatprep.mubr.f32.mxu0 0.0
  %290 = vmatmul.mubr.f32.gmra.mrb[0].mxu0 %v208
  %v291 = vpop.f32.mrb[0].mxu0
  %v292 = vadd.f32 %v195, %v291
  %v293 = vpop.f32.mrb[0].mxu0
  %294 = vdwg.mxu0
  %v295 = vmax.f32 %v277, 0.0
  %v296 = vmax.f32 %v282, 0.0
  %v297 = vmax.f32 %v287, 0.0
  %v298 = vmax.f32 %v292, 0.0
  %299 = vst [vmem:[%s5] sm:$0xff] %v295
  %300 = vst [vmem:[%s5 + $0x8] sm:$0xff] %v296
  %301 = vst [vmem:[%s5 + $0x10] sm:$0xff] %v297
  %302 = vst [vmem:[%s5 + $0x18] sm:$0xff] %v298
  // Predicated region
  $region22: #{forward.1} parent=0 // pred_check
    _
  $region23: #{forward.1} parent=0 // pred_check_branch
    %304 = sbr.rel (0) target = $region25
  $region24: #{forward.1} parent=0 // pred_region
    _
  $region25: #{forward.1} parent=0 // pred_fallthru
    _
  // Predicated region
  $region26: #{forward.1} parent=0 // pred_check
    _
  $region27: #{forward.1} parent=0 // pred_check_branch
    %306 = sbr.rel (0) target = $region29
  $region28: #{forward.1} parent=0 // pred_region
    _
  $region29: #{forward.1} parent=0 // pred_fallthru
    _

</llo_original>
